<compile_context>
chip_gen: v6e
topology: v6e:2x2x1
jax: 0.10.0
libtpu: 0.0.40
codegen_flags: <defaults>
</compile_context>

<pallas_src>
import jax
import jax.numpy as jnp
from jax.experimental import pallas as pl
from jax.experimental.pallas import tpu as pltpu

_LANE = 128
_SUBLANE = 8
_SMALL_BATCH_CUTOFF = 512     # gridless below this
_MAX_BATCH_TILE = 8192        # cap (~85% HBM roofline reached well before this)
_VMEM_WORK_BUDGET = 24 * 1024 * 1024   # conservative; fits v7x 32 MiB scoped limit


def _round_up(v, m):
    return ((v + m - 1) // m) * m


def _mlp_head_kernel(x_ref, w1_ref, b1_ref, w2_ref, b2_ref, o_ref):
    # fc1 on the MXU, f32 accumulation.
    h = jnp.dot(x_ref[...], w1_ref[...], preferred_element_type=jnp.float32)
    # bias + ReLU in f32 on the VPU.
    h = jnp.maximum(h + b1_ref[...], 0.0)
    # Downcast only when fc2 weights are narrower (bf16-at-source path).
    if h.dtype != w2_ref.dtype:
        h = h.astype(w2_ref.dtype)
    # fc2 on the MXU (N=2, Mosaic pads internally), f32 accumulation + bias.
    out = jnp.dot(h, w2_ref[...], preferred_element_type=jnp.float32)
    out = out + b2_ref[...]
    o_ref[...] = out.astype(o_ref.dtype)


def disease_classifier_forward(x, w1, b1, w2, b2):
    """x: (B, in_dim); w1: (in_dim, fc_dim); b1: (fc_dim,); w2: (fc_dim, 2); b2: (2,)."""
    B, in_dim = x.shape
    fc_dim, out_dim = w2.shape
    out_dtype = x.dtype

    # Weights follow x's dtype (tiny, VMEM-resident); biases stay f32 for the
    # f32 epilogue. No wrapper-side cast of the x stream itself.
    w1c = w1.astype(x.dtype)
    w2c = w2.astype(x.dtype)
    b1c = b1.astype(jnp.float32).reshape(1, fc_dim)
    b2c = b2.astype(jnp.float32).reshape(1, out_dim)

    in_itemsize = jnp.dtype(x.dtype).itemsize
    out_itemsize = jnp.dtype(out_dtype).itemsize
    w_bytes = (w1c.size * jnp.dtype(w1c.dtype).itemsize
               + w2c.size * jnp.dtype(w2c.dtype).itemsize
               + b1c.size * 4 + b2c.size * 4)
    cost = pl.CostEstimate(
        flops=2 * B * (in_dim * fc_dim + fc_dim * out_dim),
        transcendentals=0,
        bytes_accessed=int(B * in_dim * in_itemsize
                           + w_bytes
                           + B * out_dim * out_itemsize),
    )

    if B <= _SMALL_BATCH_CUTOFF:
        # Small batch: gridless call, whole-array VMEM blocks, no pipelining
        # machinery (no 1-point-grid prologue/epilogue, no double-buffering).
        return pl.pallas_call(
            _mlp_head_kernel,
            out_shape=jax.ShapeDtypeStruct((B, out_dim), out_dtype),
            in_specs=[pl.BlockSpec(memory_space=pltpu.MemorySpace.VMEM)] * 5,
            out_specs=pl.BlockSpec(memory_space=pltpu.MemorySpace.VMEM),
            cost_estimate=cost,
        )(x, w1c, b1c, w2c, b2c)

    # ---- large batch: tile the batch axis only ------------------------------
    # VMEM footprint per row, accounting for (8,128) lane padding of narrow
    # dims (x block and out block are lane-padded in VMEM even though the HBM
    # arrays are narrow), double-buffered x + out tiles.
    x_row = _round_up(in_dim, _LANE) * in_itemsize
    o_row = _round_up(out_dim, _LANE) * out_itemsize
    per_row = 2 * (x_row + o_row)
    max_tb = (_VMEM_WORK_BUDGET - w_bytes) // max(per_row, 1)
    max_tb = max(_SUBLANE, min(_MAX_BATCH_TILE, (max_tb // _SUBLANE) * _SUBLANE))

    # Pick the largest tile that fits, then force an even step count (>= 2) so
    # v7x's two TensorCores get a balanced "parallel" split.
    steps = max(2, pl.cdiv(B, max_tb))
    if steps % 2:
        steps += 1
    TB = max(_SUBLANE, min(max_tb, _round_up(pl.cdiv(B, steps), _SUBLANE)))
    grid = (pl.cdiv(B, TB),)   # no jnp.pad: Pallas masks the ragged last block

    return pl.pallas_call(
        _mlp_head_kernel,
        out_shape=jax.ShapeDtypeStruct((B, out_dim), out_dtype),
        grid=grid,
        in_specs=[
            pl.BlockSpec((TB, in_dim), lambda i: (i, 0)),       # x: batch-tiled
            pl.BlockSpec((in_dim, fc_dim), lambda i: (0, 0)),   # w1: resident
            pl.BlockSpec((1, fc_dim), lambda i: (0, 0)),        # b1: resident
            pl.BlockSpec((fc_dim, out_dim), lambda i: (0, 0)),  # w2: resident
            pl.BlockSpec((1, out_dim), lambda i: (0, 0)),       # b2: resident
        ],
        out_specs=pl.BlockSpec((TB, out_dim), lambda i: (i, 0)),  # narrow (.,2) out
        compiler_params=pltpu.CompilerParams(
            dimension_semantics=("parallel",),   # shards across the 2 TCs on v7x
            vmem_limit_bytes=32 * 1024 * 1024,   # lifts v5e's 16 MiB default, safe on v7x
        ),
        cost_estimate=cost,
    )(x, w1c, b1c, w2c, b2c)


def init_params(key, in_dim, cls_fc_dim):
    """Deterministic init mimicking PyTorch nn.Linear defaults (uniform +/- 1/sqrt(fan_in))."""
    k1, k2, k3, k4 = jax.random.split(key, 4)
    bound1 = 1.0 / jnp.sqrt(in_dim)
    bound2 = 1.0 / jnp.sqrt(cls_fc_dim)
    # Stored already transposed relative to torch's (out, in) convention.
    w1 = jax.random.uniform(k1, (in_dim, cls_fc_dim), jnp.float32, -bound1, bound1)
    b1 = jax.random.uniform(k2, (cls_fc_dim,), jnp.float32, -bound1, bound1)
    w2 = jax.random.uniform(k3, (cls_fc_dim, 2), jnp.float32, -bound2, bound2)
    b2 = jax.random.uniform(k4, (2,), jnp.float32, -bound2, bound2)
    return w1, b1, w2, b2


if __name__ == "__main__":
    key = jax.random.PRNGKey(0)
    kx, kp, kx2 = jax.random.split(key, 3)

    in_dim = 32          # feature dim fed into the classifier head
    cls_fc_dim = 32      # args.cls_fc_dim

    w1, b1, w2, b2 = init_params(kp, in_dim, cls_fc_dim)

    # --- small batch: gridless whole-block path ------------------------------
    x_small = jax.random.normal(kx, (8, in_dim), jnp.float32)
    out_small = jax.block_until_ready(
        disease_classifier_forward(x_small, w1, b1, w2, b2))
    ref_small = jnp.maximum(x_small @ w1 + b1, 0.0) @ w2 + b2
    assert out_small.shape == (8, 2)
    assert jnp.allclose(out_small, ref_small, atol=1e-5, rtol=1e-5)

    # --- larger batch: batch-tiled grid path, B not a multiple of the tile ---
    B2 = 1064
    x_big = jax.random.normal(kx2, (B2, in_dim), jnp.float32)
    out_big = jax.block_until_ready(
        disease_classifier_forward(x_big, w1, b1, w2, b2))
    ref_big = jnp.maximum(x_big @ w1 + b1, 0.0) @ w2 + b2
    assert out_big.shape == (B2, 2)
    assert jnp.allclose(out_big, ref_big, atol=1e-5, rtol=1e-5)

    # --- bf16-at-source path (caller supplies bf16 x; f32 MXU accumulation) --
    x_big_bf16 = x_big.astype(jnp.bfloat16)
    out_bf16 = jax.block_until_ready(
        disease_classifier_forward(x_big_bf16, w1, b1, w2, b2))
    assert out_bf16.shape == (B2, 2)
    assert jnp.allclose(out_bf16.astype(jnp.float32), ref_big, atol=1e-1, rtol=1e-1)

    print("KERNEL_OK")
</pallas_src>

<mosaic_0001>
module attributes {stable_mosaic.version = 11 : i64} {
  func.func @_mlp_head_kernel(%arg0: memref<8x32xf32, #tpu.memory_space<vmem>>, %arg1: memref<32x32xf32, #tpu.memory_space<vmem>>, %arg2: memref<1x32xf32, #tpu.memory_space<vmem>>, %arg3: memref<32x2xf32, #tpu.memory_space<vmem>>, %arg4: memref<1x2xf32, #tpu.memory_space<vmem>>, %arg5: memref<8x2xf32, #tpu.memory_space<vmem>>) attributes {dimension_semantics = [], scalar_prefetch = 0 : i64, scratch_operands = 0 : i64, tpu.core_type = #tpu.core_type<tc>} {
    %c0 = arith.constant 0 : index
    %c0_0 = arith.constant 0 : index
    %0 = vector.load %arg0[%c0, %c0_0] : memref<8x32xf32, #tpu.memory_space<vmem>>, vector<8x32xf32>
    %c0_1 = arith.constant 0 : index
    %c0_2 = arith.constant 0 : index
    %1 = vector.load %arg1[%c0_1, %c0_2] : memref<32x32xf32, #tpu.memory_space<vmem>>, vector<32x32xf32>
    %cst = arith.constant dense<0.000000e+00> : vector<8x32xf32>
    %2 = tpu.matmul %0, %1, %cst {dimension_numbers = #tpu.dot_dimension_numbers<[1], [0], [0], [1], [0, 0, 1, 1], [], []>} : vector<8x32xf32>, vector<32x32xf32>, vector<8x32xf32> -> vector<8x32xf32>
    %c0_3 = arith.constant 0 : index
    %c0_4 = arith.constant 0 : index
    %3 = vector.load %arg2[%c0_3, %c0_4] : memref<1x32xf32, #tpu.memory_space<vmem>>, vector<1x32xf32>
    %4 = vector.broadcast %3 : vector<1x32xf32> to vector<8x32xf32>
    %5 = arith.addf %2, %4 : vector<8x32xf32>
    %cst_5 = arith.constant 0.000000e+00 : f32
    %6 = vector.broadcast %cst_5 : f32 to vector<8x32xf32>
    %7 = arith.maximumf %5, %6 : vector<8x32xf32>
    %c0_6 = arith.constant 0 : index
    %c0_7 = arith.constant 0 : index
    %8 = vector.load %arg3[%c0_6, %c0_7] : memref<32x2xf32, #tpu.memory_space<vmem>>, vector<32x2xf32>
    %cst_8 = arith.constant dense<0.000000e+00> : vector<8x2xf32>
    %9 = tpu.matmul %7, %8, %cst_8 {dimension_numbers = #tpu.dot_dimension_numbers<[1], [0], [0], [1], [0, 0, 1, 1], [], []>} : vector<8x32xf32>, vector<32x2xf32>, vector<8x2xf32> -> vector<8x2xf32>
    %c0_9 = arith.constant 0 : index
    %c0_10 = arith.constant 0 : index
    %10 = vector.load %arg4[%c0_9, %c0_10] : memref<1x2xf32, #tpu.memory_space<vmem>>, vector<1x2xf32>
    %11 = vector.broadcast %10 : vector<1x2xf32> to vector<8x2xf32>
    %12 = arith.addf %9, %11 : vector<8x2xf32>
    %c0_11 = arith.constant 0 : index
    %c0_12 = arith.constant 0 : index
    %13 = vector.load %arg5[%c0_11, %c0_12] : memref<8x2xf32, #tpu.memory_space<vmem>>, vector<8x2xf32>
    tpu.vector_store %arg5[%c0_11, %c0_12], %12 {strides = array<i32>} : memref<8x2xf32, #tpu.memory_space<vmem>>, vector<8x2xf32>,
    return
  }
}

</mosaic_0001>

<llo_original>
// kernel: tpu_custom_call.1
$region0: #{tpu_custom_call.1}
  #allocation0 [shape = 'u32[]', space=smem, size = 0x4, offset = 0x4, fixed_abs, tag = 'smem constant byte address 0x4 - core index']
  #allocation1 [shape = 'u32[144,128]{1,0:T(1,128)}', space=vmem, size = 0x12000, scoped, tag = 'internal scratch']
  %s0 = inlined_call_operand.hbm [shape: f32[8,32], index: 0, kind: input, shape index: {}]
  %s1 = inlined_call_operand.vmem [shape: f32[32,32], index: 1, kind: input, shape index: {}]
  %s2 = inlined_call_operand.vmem [shape: f32[1,32], index: 2, kind: input, shape index: {}]
  %s3 = inlined_call_operand.vmem [shape: f32[32,2], index: 3, kind: input, shape index: {}]
  %s4 = inlined_call_operand.vmem [shape: f32[1,2], index: 4, kind: input, shape index: {}]
  %s5 = inlined_call_operand.vmem [shape: f32[8,2], index: 5, kind: output, shape index: {}]
  %s6 = sld [smem:[#allocation0]]
  $region34: #{tpu_custom_call.1} parent=0
    _
  %s8 = ssub.s32 1, %s6
  %s9 = scalar_select 0, %s8, %s6
  $region1: #{tpu_custom_call.1} parent=0
    #allocation2 [shape = 'u8[4096]{0}', space=vmem, size = 0x1000, scoped, tag = 'input window, operand 0, single buffered']
    #allocation3 [shape = 's32[1]{0}', space=sflag, size = 0x4, scoped, tag = 'scoped memory for tpu_custom_call.1']
    %10 = vsyncpa [#allocation3], 0
    // Predicated region
    $region2: #{tpu_custom_call.1} parent=1 // pred_check
      _
    $region3: #{tpu_custom_call.1} parent=1 // pred_check_branch
      %12 = sbr.rel (0) target = $region5
    $region4: #{tpu_custom_call.1} parent=1 // pred_region
      %s14 = ssub.s32 128, 128
      %15 = vsyncadd [#allocation3], %s14
      %s17 = sshll.u32 [#allocation2], 4
      %s18 = int_to_ptr.vmem [resolvable:$true] %s17
      %20 = dma.hbm_to_vmem [thread:$0]  %s0, 128, %s18, [#allocation3]
    $region5: #{tpu_custom_call.1} parent=1 // pred_fallthru
      _
    // Predicated region
    $region6: #{tpu_custom_call.1} parent=1 // pred_check
      _
    $region7: #{tpu_custom_call.1} parent=1 // pred_check_branch
      %22 = sbr.rel (0) target = $region9
    $region8: #{tpu_custom_call.1} parent=1 // pred_region
      _
    $region9: #{tpu_custom_call.1} parent=1 // pred_fallthru
      _
    // Predicated region
    $region10: #{tpu_custom_call.1} parent=1 // pred_check
      _
    $region11: #{tpu_custom_call.1} parent=1 // pred_check_branch
      %24 = sbr.rel (0) target = $region13
    $region12: #{tpu_custom_call.1} parent=1 // pred_region
      _
    $region13: #{tpu_custom_call.1} parent=1 // pred_fallthru
      _
    // Predicated region
    $region14: #{tpu_custom_call.1} parent=1 // pred_check
      _
    $region15: #{tpu_custom_call.1} parent=1 // pred_check_branch
      %26 = sbr.rel (0) target = $region17
    $region16: #{tpu_custom_call.1} parent=1 // pred_region
      _
    $region17: #{tpu_custom_call.1} parent=1 // pred_fallthru
      _
    // Predicated region
    $region18: #{tpu_custom_call.1} parent=1 // pred_check
      _
    $region19: #{tpu_custom_call.1} parent=1 // pred_check_branch
      %28 = sbr.rel (0) target = $region21
    $region20: #{tpu_custom_call.1} parent=1 // pred_region
      _
    $region21: #{tpu_custom_call.1} parent=1 // pred_fallthru
      _
    // Predicated region
    $region22: #{tpu_custom_call.1} parent=1 // pred_check
      _
    $region23: #{tpu_custom_call.1} parent=1 // pred_check_branch
      %30 = sbr.rel (0) target = $region25
    $region24: #{tpu_custom_call.1} parent=1 // pred_region
      %31 = dma.done [#allocation3], 128
    $region25: #{tpu_custom_call.1} parent=1 // pred_fallthru
      _
    %v32 = vld [vmem:[#allocation2] sm:$0xff]
    %v33 = vld [vmem:[%s1] sm:$0xff]
    %v34 = vld [vmem:[%s1 + $0x8] sm:$0xff]
    %v35 = vld [vmem:[%s1 + $0x10] sm:$0xff]
    %v36 = vld [vmem:[%s1 + $0x18] sm:$0xff]
    %v37 = vld [vmem:[%s2] sm:$0x1]
    %v39 = vlaneseq
    %v40 = vshrl.u32 %v39, 7
    %v41 = vsub.s32 0, %v40
    %v42 = vrot.slane %v37, %v41
    %vm44 = vcmask 261120
    %v46 = vsel %vm44, %v32, 0
    %48 = vmatprep.subr.mxu0 0.0
    %49 = vmatpush1.msra.mxu0 0.0
    %50 = vmatprep.subr.mxu0 0.0
    %51 = vmatpush1.msra.mxu0 0.0
    %52 = vmatprep.subr.mxu0 0.0
    %53 = vmatpush1.msra.mxu0 0.0
    %54 = vmatprep.subr.mxu0 0.0
    %55 = vmatpush1.msra.mxu0 0.0
    %56 = vmatprep.subr.mxu0 0.0
    %57 = vmatpush1.msra.mxu0 0.0
    %58 = vmatprep.subr.mxu0 0.0
    %59 = vmatpush1.msra.mxu0 0.0
    %60 = vmatprep.subr.mxu0 0.0
    %61 = vmatpush1.msra.mxu0 0.0
    %62 = vmatprep.subr.mxu0 0.0
    %63 = vmatpush1.msra.mxu0 0.0
    %64 = vmatprep.subr.mxu0 0.0
    %65 = vmatpush1.msra.mxu0 0.0
    %66 = vmatprep.subr.mxu0 0.0
    %67 = vmatpush1.msra.mxu0 0.0
    %68 = vmatprep.subr.mxu0 0.0
    %69 = vmatpush1.msra.mxu0 0.0
    %70 = vmatprep.subr.mxu0 0.0
    %71 = vmatpush1.msra.mxu0 0.0
    %72 = vmatprep.subr.mxu0 0.0
    %73 = vmatpush1.msra.mxu0 %v36
    %74 = vmatprep.subr.mxu0 0.0
    %75 = vmatpush1.msra.mxu0 %v35
    %76 = vmatprep.subr.mxu0 0.0
    %77 = vmatpush1.msra.mxu0 %v34
    %78 = vmatprep.subr.mxu0 0.0
    %79 = vmatpush1.msra.mxu0 %v33
    %80 = vmatprep.subr.mxu0 0.0
    %81 = vmatpush2.msra.mxu0 0.0
    %82 = vmatprep.subr.mxu0 0.0
    %83 = vmatpush2.msra.mxu0 0.0
    %84 = vmatprep.subr.mxu0 0.0
    %85 = vmatpush2.msra.mxu0 0.0
    %86 = vmatprep.subr.mxu0 0.0
    %87 = vmatpush2.msra.mxu0 0.0
    %88 = vmatprep.subr.mxu0 0.0
    %89 = vmatpush2.msra.mxu0 0.0
    %90 = vmatprep.subr.mxu0 0.0
    %91 = vmatpush2.msra.mxu0 0.0
    %92 = vmatprep.subr.mxu0 0.0
    %93 = vmatpush2.msra.mxu0 0.0
    %94 = vmatprep.subr.mxu0 0.0
    %95 = vmatpush2.msra.mxu0 0.0
    %96 = vmatprep.subr.mxu0 0.0
    %97 = vmatpush2.msra.mxu0 0.0
    %98 = vmatprep.subr.mxu0 0.0
    %99 = vmatpush2.msra.mxu0 0.0
    %100 = vmatprep.subr.mxu0 0.0
    %101 = vmatpush2.msra.mxu0 0.0
    %102 = vmatprep.subr.mxu0 0.0
    %103 = vmatpush2.msra.mxu0 0.0
    %104 = vmatprep.subr.mxu0 0.0
    %105 = vmatpush2.msra.mxu0 0.0
    %106 = vmatprep.subr.mxu0 0.0
    %107 = vmatpush2.msra.mxu0 0.0
    %108 = vmatprep.subr.mxu0 0.0
    %109 = vmatpush2.msra.mxu0 0.0
    %110 = vmatprep.subr.mxu0 0.0
    %111 = vmatpush2.msra.mxu0 0.0
    %112 = vmatprep.mubr.f32.mxu0 0.0
    %113 = vmatmul.mubr.f32.gmra.mxu0 %v46
    %v114 = vpop.f32.mrf.mxu0
    %v115 = vadd.f32 %v42, %v114
    %v116 = vpop.f32.mrf.mxu0
    %117 = vdwg.mxu0
    %v118 = vmax.f32 %v115, 0.0
    %v119 = vld [vmem:[%s3] sm:$0xff]
    %v120 = vld [vmem:[%s3 + $0x8] sm:$0xff]
    %v121 = vld [vmem:[%s3 + $0x10] sm:$0xff]
    %v122 = vld [vmem:[%s3 + $0x18] sm:$0xff]
    %v123 = vld [vmem:[%s4] sm:$0x1]
    %v125 = vlaneseq
    %v126 = vshrl.u32 %v125, 7
    %v127 = vsub.s32 0, %v126
    %v128 = vrot.slane %v123, %v127
    %v131 = vsel %vm44, %v118, 0
    %133 = vmatprep.subr.mxu0 0.0
    %134 = vmatpush1.msra.mxu0 0.0
    %135 = vmatprep.subr.mxu0 0.0
    %136 = vmatpush1.msra.mxu0 0.0
    %137 = vmatprep.subr.mxu0 0.0
    %138 = vmatpush1.msra.mxu0 0.0
    %139 = vmatprep.subr.mxu0 0.0
    %140 = vmatpush1.msra.mxu0 0.0
    %141 = vmatprep.subr.mxu0 0.0
    %142 = vmatpush1.msra.mxu0 0.0
    %143 = vmatprep.subr.mxu0 0.0
    %144 = vmatpush1.msra.mxu0 0.0
    %145 = vmatprep.subr.mxu0 0.0
    %146 = vmatpush1.msra.mxu0 0.0
    %147 = vmatprep.subr.mxu0 0.0
    %148 = vmatpush1.msra.mxu0 0.0
    %149 = vmatprep.subr.mxu0 0.0
    %150 = vmatpush1.msra.mxu0 0.0
    %151 = vmatprep.subr.mxu0 0.0
    %152 = vmatpush1.msra.mxu0 0.0
    %153 = vmatprep.subr.mxu0 0.0
    %154 = vmatpush1.msra.mxu0 0.0
    %155 = vmatprep.subr.mxu0 0.0
    %156 = vmatpush1.msra.mxu0 0.0
    %157 = vmatprep.subr.mxu0 0.0
    %158 = vmatpush1.msra.mxu0 %v122
    %159 = vmatprep.subr.mxu0 0.0
    %160 = vmatpush1.msra.mxu0 %v121
    %161 = vmatprep.subr.mxu0 0.0
    %162 = vmatpush1.msra.mxu0 %v120
    %163 = vmatprep.subr.mxu0 0.0
    %164 = vmatpush1.msra.mxu0 %v119
    %165 = vmatprep.subr.mxu0 0.0
    %166 = vmatpush2.msra.mxu0 0.0
    %167 = vmatprep.subr.mxu0 0.0
    %168 = vmatpush2.msra.mxu0 0.0
    %169 = vmatprep.subr.mxu0 0.0
    %170 = vmatpush2.msra.mxu0 0.0
    %171 = vmatprep.subr.mxu0 0.0
    %172 = vmatpush2.msra.mxu0 0.0
    %173 = vmatprep.subr.mxu0 0.0
    %174 = vmatpush2.msra.mxu0 0.0
    %175 = vmatprep.subr.mxu0 0.0
    %176 = vmatpush2.msra.mxu0 0.0
    %177 = vmatprep.subr.mxu0 0.0
    %178 = vmatpush2.msra.mxu0 0.0
    %179 = vmatprep.subr.mxu0 0.0
    %180 = vmatpush2.msra.mxu0 0.0
    %181 = vmatprep.subr.mxu0 0.0
    %182 = vmatpush2.msra.mxu0 0.0
    %183 = vmatprep.subr.mxu0 0.0
    %184 = vmatpush2.msra.mxu0 0.0
    %185 = vmatprep.subr.mxu0 0.0
    %186 = vmatpush2.msra.mxu0 0.0
    %187 = vmatprep.subr.mxu0 0.0
    %188 = vmatpush2.msra.mxu0 0.0
    %189 = vmatprep.subr.mxu0 0.0
    %190 = vmatpush2.msra.mxu0 0.0
    %191 = vmatprep.subr.mxu0 0.0
    %192 = vmatpush2.msra.mxu0 0.0
    %193 = vmatprep.subr.mxu0 0.0
    %194 = vmatpush2.msra.mxu0 0.0
    %195 = vmatprep.subr.mxu0 0.0
    %196 = vmatpush2.msra.mxu0 0.0
    %197 = vmatprep.mubr.f32.mxu0 0.0
    %198 = vmatmul.mubr.f32.gmra.mxu0 %v131
    %v199 = vpop.f32.mrf.mxu0
    %v200 = vadd.f32 %v128, %v199
    %v201 = vpop.f32.mrf.mxu0
    %202 = vdwg.mxu0
    %vm203 = vcmask 15360
    %204 = vst.msk [vmem:[%s5] sm:$0xff] %vm203, %v200
    // Predicated region
    $region26: #{tpu_custom_call.1} parent=1 // pred_check
      _
    $region27: #{tpu_custom_call.1} parent=1 // pred_check_branch
      %206 = sbr.rel (0) target = $region29
    $region28: #{tpu_custom_call.1} parent=1 // pred_region
      _
    $region29: #{tpu_custom_call.1} parent=1 // pred_fallthru
      _
    // Predicated region
    $region30: #{tpu_custom_call.1} parent=1 // pred_check
      _
    $region31: #{tpu_custom_call.1} parent=1 // pred_check_branch
      %208 = sbr.rel (0) target = $region33
    $region32: #{tpu_custom_call.1} parent=1 // pred_region
      _
    $region33: #{tpu_custom_call.1} parent=1 // pred_fallthru
      _
    %209 = vsyncpa [#allocation3], 1

</llo_original>
